<compile_context>
chip_gen: v7x
topology: tpu7x:2x2x1
jax: 0.10.0
libtpu: 0.0.40
codegen_flags: <defaults>
</compile_context>

<pallas_src>
import jax
import jax.numpy as jnp
from jax.experimental import pallas as pl
from jax.experimental.pallas import tpu as pltpu

NUM_MODULES = 3
COMMUNICATION = True
IN_DIM = NUM_MODULES * 9 if COMMUNICATION else 2 * NUM_MODULES + 1  # 27
H1, H2, OUT = 32, 64, 3

OUT_PAD = 8     # 3 -> 8: tiny masked store; wrapper slices [:, :3]
TB = 1024       # default batch tile (sweep 512-2048); VMEM use stays tiny


def fcnn_kernel(x_ref, w1_ref, b1_ref, w2_ref, b2_ref, w3_ref, b3_ref, o_ref):
    """One (tb, 27) batch tile through the whole MLP.

    Dots accumulate in f32 on the MXU; bias-add/ReLU stay in f32 (no bf16
    elementwise -> safe on v5e); intermediates are cast to the weight dtype
    only when feeding the next matmul (no-op in f32 mode).
    """
    x = x_ref[...]                                                    # (tb, 27)
    h1 = jnp.dot(x, w1_ref[...], preferred_element_type=jnp.float32) + b1_ref[...]
    h1 = jnp.maximum(h1, 0.0)                                         # f32 ReLU
    h2 = jnp.dot(h1.astype(w2_ref.dtype), w2_ref[...],
                 preferred_element_type=jnp.float32) + b2_ref[...]
    h2 = jnp.maximum(h2, 0.0)                                         # f32 ReLU
    o_ref[...] = (jnp.dot(h2.astype(w3_ref.dtype), w3_ref[...],
                          preferred_element_type=jnp.float32)
                  + b3_ref[...])                                      # (tb, 8)


def prepare_params(params, compute_dtype=jnp.float32):
    """Pad w3/b3 columns 3->8 and cast weights. Call ONCE per parameter set.

    Biases stay f32 because they are added to the f32 MXU accumulator.
    """
    w1, b1, w2, b2, w3, b3 = params
    w3p = jnp.pad(w3, ((0, 0), (0, OUT_PAD - w3.shape[1])))
    b3p = jnp.pad(b3, ((0, 0), (0, OUT_PAD - b3.shape[1])))
    return (w1.astype(compute_dtype), b1.astype(jnp.float32),
            w2.astype(compute_dtype), b2.astype(jnp.float32),
            w3p.astype(compute_dtype), b3p.astype(jnp.float32))


def _choose_tb(batch, tb):
    """Tile is a multiple of 8 and at most ceil(batch/2) (>=2 grid steps when
    possible, so v7x megacore sharding has something to shard)."""
    half = -(-batch // 2)          # ceil(B / 2)
    half = -(-half // 8) * 8       # round up to a multiple of 8
    return max(8, min(tb, half))


def fcnn_forward(x, prepared_params, *, tb=TB):
    """Pallas path. `prepared_params` comes from prepare_params().

    For the bf16-streaming mode pass x already in bf16 if possible so the
    cast does not cost an extra HBM round-trip.
    """
    w1, b1, w2, b2, w3, b3 = prepared_params
    compute_dtype = w1.dtype

    B = x.shape[0]
    tb = _choose_tb(B, tb)
    n_tiles = pl.cdiv(B, tb)
    b_pad = n_tiles * tb

    x_p = x.astype(compute_dtype)
    if b_pad != B:
        # Zero-padded rows produce ReLU(bias)-propagated garbage in rows
        # [B:b_pad); they are sliced off below -- keep that invariant.
        x_p = jnp.pad(x_p, ((0, b_pad - B), (0, 0)))

    itemsize = jnp.dtype(compute_dtype).itemsize
    flops = 2 * b_pad * (IN_DIM * H1 + H1 * H2 + H2 * OUT_PAD)
    bytes_accessed = (b_pad * IN_DIM * itemsize            # x read
                      + b_pad * OUT_PAD * 4                # y write
                      + (w1.size + w2.size + w3.size) * itemsize
                      + (b1.size + b2.size + b3.size) * 4)

    resident = lambda i: (0, 0)   # weights/biases: same block every grid step
    out_padded = pl.pallas_call(
        fcnn_kernel,
        out_shape=jax.ShapeDtypeStruct((b_pad, OUT_PAD), jnp.float32),
        grid=(n_tiles,),
        in_specs=[
            pl.BlockSpec((tb, IN_DIM), lambda i: (i, 0)),    # x: streamed tiles
            pl.BlockSpec((IN_DIM, H1), resident),            # w1 (27, 32)
            pl.BlockSpec((1, H1), resident),                 # b1
            pl.BlockSpec((H1, H2), resident),                # w2
            pl.BlockSpec((1, H2), resident),                 # b2
            pl.BlockSpec((H2, OUT_PAD), resident),           # w3 (64, 8)
            pl.BlockSpec((1, OUT_PAD), resident),            # b3 (1, 8)
        ],
        out_specs=pl.BlockSpec((tb, OUT_PAD), lambda i: (i, 0)),
        compiler_params=pltpu.CompilerParams(
            dimension_semantics=("parallel",),               # 2 TCs on v7x
        ),
        cost_estimate=pl.CostEstimate(
            flops=flops, transcendentals=0, bytes_accessed=bytes_accessed),
    )(x_p, w1, b1, w2, b2, w3, b3)

    return out_padded[:B, :OUT]


def fcnn_apply(x, params, prepared_params=None, *, tb=TB, min_pallas_batch=1024):
    """Dispatcher: plain XLA for tiny batches (latency-bound), Pallas otherwise."""
    if x.shape[0] < min_pallas_batch:
        return reference_forward(x, params)
    if prepared_params is None:
        prepared_params = prepare_params(params)
    return fcnn_forward(x, prepared_params, tb=tb)


def init_params(key):
    """Deterministic init mimicking PyTorch Linear default: U(-1/sqrt(fan_in), +)."""
    def linear(k, fan_in, fan_out):
        kw, kb = jax.random.split(k)
        bound = 1.0 / jnp.sqrt(fan_in)
        # stored as (in, out) so the kernel computes x @ W + b (== x @ W_torch.T + b)
        w = jax.random.uniform(kw, (fan_in, fan_out), jnp.float32, -bound, bound)
        b = jax.random.uniform(kb, (1, fan_out), jnp.float32, -bound, bound)
        return w, b

    k1, k2, k3 = jax.random.split(key, 3)
    w1, b1 = linear(k1, IN_DIM, H1)
    w2, b2 = linear(k2, H1, H2)
    w3, b3 = linear(k3, H2, OUT)
    return (w1, b1, w2, b2, w3, b3)


def reference_forward(x, params):
    w1, b1, w2, b2, w3, b3 = params
    h1 = jnp.maximum(x @ w1 + b1, 0.0)
    h2 = jnp.maximum(h1 @ w2 + b2, 0.0)
    return h2 @ w3 + b3


if __name__ == "__main__":
    key = jax.random.PRNGKey(0)
    kx, kx2, kp = jax.random.split(key, 3)
    params = init_params(kp)
    prepared_f32 = prepare_params(params, jnp.float32)     # hoisted, done once

    # Small batch, single tile -- forced through the Pallas path to exercise it
    # (production use would take the fcnn_apply XLA fallback at this size).
    batch = 4
    x = jax.random.normal(kx, (batch, IN_DIM), dtype=jnp.float32)
    ref = reference_forward(x, params)
    out = jax.block_until_ready(fcnn_forward(x, prepared_f32))
    assert out.shape == (batch, OUT)
    assert jnp.allclose(out, ref, atol=1e-5, rtol=1e-5)

    # Multi-tile path: batch tiles stream while weights stay VMEM-resident.
    batch2 = 300
    x2 = jax.random.normal(kx2, (batch2, IN_DIM), dtype=jnp.float32)
    ref2 = reference_forward(x2, params)
    out2 = jax.block_until_ready(fcnn_forward(x2, prepared_f32, tb=128))
    assert out2.shape == (batch2, OUT)
    assert jnp.allclose(out2, ref2, atol=1e-5, rtol=1e-5)

    # bf16-streaming mode (all generations incl. v5e): halves the x HBM read,
    # f32 MXU accumulation, f32 bias/ReLU. Intentional accuracy/bandwidth trade.
    prepared_bf16 = prepare_params(params, jnp.bfloat16)
    out_bf16 = jax.block_until_ready(fcnn_forward(x2, prepared_bf16, tb=128))
    assert out_bf16.shape == (batch2, OUT)
    assert jnp.allclose(out_bf16, ref2, atol=5e-2, rtol=5e-2)

    print("KERNEL_OK")
</pallas_src>

<mosaic_0001>
module attributes {stable_mosaic.version = 11 : i64} {
  func.func @fcnn_kernel(%arg0: i32, %arg1: memref<8x27xf32, #tpu.memory_space<vmem>>, %arg2: memref<27x32xf32, #tpu.memory_space<vmem>>, %arg3: memref<1x32xf32, #tpu.memory_space<vmem>>, %arg4: memref<32x64xf32, #tpu.memory_space<vmem>>, %arg5: memref<1x64xf32, #tpu.memory_space<vmem>>, %arg6: memref<64x8xf32, #tpu.memory_space<vmem>>, %arg7: memref<1x8xf32, #tpu.memory_space<vmem>>, %arg8: memref<8x8xf32, #tpu.memory_space<vmem>>) attributes {dimension_semantics = [#tpu.dimension_semantics<parallel>], iteration_bounds = array<i64: 1>, scalar_prefetch = 0 : i64, scratch_operands = 0 : i64, tpu.core_type = #tpu.core_type<tc>, window_params = [{transform_indices = @transform_0, window_bounds = array<i64: 8, 27>}, {pipeline_mode = #tpu.pipeline_mode<synchronous>, transform_indices = @transform_1, window_bounds = array<i64: 27, 32>}, {pipeline_mode = #tpu.pipeline_mode<synchronous>, transform_indices = @transform_2, window_bounds = array<i64: 1, 32>}, {pipeline_mode = #tpu.pipeline_mode<synchronous>, transform_indices = @transform_3, window_bounds = array<i64: 32, 64>}, {pipeline_mode = #tpu.pipeline_mode<synchronous>, transform_indices = @transform_4, window_bounds = array<i64: 1, 64>}, {pipeline_mode = #tpu.pipeline_mode<synchronous>, transform_indices = @transform_5, window_bounds = array<i64: 64, 8>}, {pipeline_mode = #tpu.pipeline_mode<synchronous>, transform_indices = @transform_6, window_bounds = array<i64: 1, 8>}, {transform_indices = @transform_7, window_bounds = array<i64: 8, 8>}]} {
    %c0 = arith.constant 0 : index
    %c0_0 = arith.constant 0 : index
    %0 = vector.load %arg1[%c0, %c0_0] : memref<8x27xf32, #tpu.memory_space<vmem>>, vector<8x27xf32>
    %c0_1 = arith.constant 0 : index
    %c0_2 = arith.constant 0 : index
    %1 = vector.load %arg2[%c0_1, %c0_2] : memref<27x32xf32, #tpu.memory_space<vmem>>, vector<27x32xf32>
    %cst = arith.constant dense<0.000000e+00> : vector<8x32xf32>
    %2 = tpu.matmul %0, %1, %cst {dimension_numbers = #tpu.dot_dimension_numbers<[1], [0], [0], [1], [0, 0, 1, 1], [], []>} : vector<8x27xf32>, vector<27x32xf32>, vector<8x32xf32> -> vector<8x32xf32>
    %c0_3 = arith.constant 0 : index
    %c0_4 = arith.constant 0 : index
    %3 = vector.load %arg3[%c0_3, %c0_4] : memref<1x32xf32, #tpu.memory_space<vmem>>, vector<1x32xf32>
    %4 = vector.broadcast %3 : vector<1x32xf32> to vector<8x32xf32>
    %5 = arith.addf %2, %4 : vector<8x32xf32>
    %cst_5 = arith.constant 0.000000e+00 : f32
    %6 = vector.broadcast %cst_5 : f32 to vector<8x32xf32>
    %7 = arith.maximumf %5, %6 : vector<8x32xf32>
    %c0_6 = arith.constant 0 : index
    %c0_7 = arith.constant 0 : index
    %8 = vector.load %arg4[%c0_6, %c0_7] : memref<32x64xf32, #tpu.memory_space<vmem>>, vector<32x64xf32>
    %cst_8 = arith.constant dense<0.000000e+00> : vector<8x64xf32>
    %9 = tpu.matmul %7, %8, %cst_8 {dimension_numbers = #tpu.dot_dimension_numbers<[1], [0], [0], [1], [0, 0, 1, 1], [], []>} : vector<8x32xf32>, vector<32x64xf32>, vector<8x64xf32> -> vector<8x64xf32>
    %c0_9 = arith.constant 0 : index
    %c0_10 = arith.constant 0 : index
    %10 = vector.load %arg5[%c0_9, %c0_10] : memref<1x64xf32, #tpu.memory_space<vmem>>, vector<1x64xf32>
    %11 = vector.broadcast %10 : vector<1x64xf32> to vector<8x64xf32>
    %12 = arith.addf %9, %11 : vector<8x64xf32>
    %cst_11 = arith.constant 0.000000e+00 : f32
    %13 = vector.broadcast %cst_11 : f32 to vector<8x64xf32>
    %14 = arith.maximumf %12, %13 : vector<8x64xf32>
    %c0_12 = arith.constant 0 : index
    %c0_13 = arith.constant 0 : index
    %15 = vector.load %arg6[%c0_12, %c0_13] : memref<64x8xf32, #tpu.memory_space<vmem>>, vector<64x8xf32>
    %cst_14 = arith.constant dense<0.000000e+00> : vector<8x8xf32>
    %16 = tpu.matmul %14, %15, %cst_14 {dimension_numbers = #tpu.dot_dimension_numbers<[1], [0], [0], [1], [0, 0, 1, 1], [], []>} : vector<8x64xf32>, vector<64x8xf32>, vector<8x8xf32> -> vector<8x8xf32>
    %c0_15 = arith.constant 0 : index
    %c0_16 = arith.constant 0 : index
    %17 = vector.load %arg7[%c0_15, %c0_16] : memref<1x8xf32, #tpu.memory_space<vmem>>, vector<1x8xf32>
    %18 = vector.broadcast %17 : vector<1x8xf32> to vector<8x8xf32>
    %19 = arith.addf %16, %18 : vector<8x8xf32>
    %c0_17 = arith.constant 0 : index
    %c0_18 = arith.constant 0 : index
    %20 = vector.load %arg8[%c0_17, %c0_18] : memref<8x8xf32, #tpu.memory_space<vmem>>, vector<8x8xf32>
    tpu.vector_store %arg8[%c0_17, %c0_18], %19 {strides = array<i32>} : memref<8x8xf32, #tpu.memory_space<vmem>>, vector<8x8xf32>,
    return
  }
  func.func @transform_0(%arg0: i32) -> (i32, i32) {
    %c0_i32 = arith.constant 0 : i32
    %c0_i32_0 = arith.constant 0 : i32
    return %arg0, %c0_i32 : i32, i32
  }
  func.func @transform_1(%arg0: i32) -> (i32, i32) {
    %c0_i32 = arith.constant 0 : i32
    %c0_i32_0 = arith.constant 0 : i32
    %c0_i32_1 = arith.constant 0 : i32
    return %c0_i32, %c0_i32_0 : i32, i32
  }
  func.func @transform_2(%arg0: i32) -> (i32, i32) {
    %c0_i32 = arith.constant 0 : i32
    %c0_i32_0 = arith.constant 0 : i32
    %c0_i32_1 = arith.constant 0 : i32
    return %c0_i32, %c0_i32_0 : i32, i32
  }
  func.func @transform_3(%arg0: i32) -> (i32, i32) {
    %c0_i32 = arith.constant 0 : i32
    %c0_i32_0 = arith.constant 0 : i32
    %c0_i32_1 = arith.constant 0 : i32
    return %c0_i32, %c0_i32_0 : i32, i32
  }
  func.func @transform_4(%arg0: i32) -> (i32, i32) {
    %c0_i32 = arith.constant 0 : i32
    %c0_i32_0 = arith.constant 0 : i32
    %c0_i32_1 = arith.constant 0 : i32
    return %c0_i32, %c0_i32_0 : i32, i32
  }
  func.func @transform_5(%arg0: i32) -> (i32, i32) {
    %c0_i32 = arith.constant 0 : i32
    %c0_i32_0 = arith.constant 0 : i32
    %c0_i32_1 = arith.constant 0 : i32
    return %c0_i32, %c0_i32_0 : i32, i32
  }
  func.func @transform_6(%arg0: i32) -> (i32, i32) {
    %c0_i32 = arith.constant 0 : i32
    %c0_i32_0 = arith.constant 0 : i32
    %c0_i32_1 = arith.constant 0 : i32
    return %c0_i32, %c0_i32_0 : i32, i32
  }
  func.func @transform_7(%arg0: i32) -> (i32, i32) {
    %c0_i32 = arith.constant 0 : i32
    %c0_i32_0 = arith.constant 0 : i32
    return %arg0, %c0_i32 : i32, i32
  }
}

</mosaic_0001>

<llo_original>
// kernel: tpu_custom_call.1
$region0: #{tpu_custom_call.1}
  #allocation0 [shape = 'u32[]', space=smem, size = 0x4, offset = 0x4, fixed_abs, tag = 'smem constant byte address 0x4 - core index']
  #allocation1 [shape = 'u32[144,128]{1,0:T(1,128)}', space=vmem, size = 0x12000, scoped, tag = 'internal scratch']
  %s0 = inlined_call_operand.vmem [shape: f32[8,27], index: 0, kind: input, shape index: {}]
  %s1 = inlined_call_operand.vmem [shape: f32[27,32], index: 1, kind: input, shape index: {}]
  %s2 = inlined_call_operand.vmem [shape: f32[1,32], index: 2, kind: input, shape index: {}]
  %s3 = inlined_call_operand.vmem [shape: f32[32,64], index: 3, kind: input, shape index: {}]
  %s4 = inlined_call_operand.vmem [shape: f32[1,64], index: 4, kind: input, shape index: {}]
  %s5 = inlined_call_operand.vmem [shape: f32[64,8], index: 5, kind: input, shape index: {}]
  %s6 = inlined_call_operand.vmem [shape: f32[1,8], index: 6, kind: input, shape index: {}]
  %s7 = inlined_call_operand.hbm [shape: f32[8,8], index: 7, kind: output, shape index: {}]
  %s8 = sld [smem:[#allocation0]]
  $region38: #{tpu_custom_call.1} parent=0
    _
  %s10 = ssub.s32 1, %s8
  %s11 = scalar_select 0, %s10, %s8
  $region1: #{tpu_custom_call.1} parent=0
    #allocation2 [shape = 'u8[4096]{0}', space=vmem, size = 0x1000, scoped, tag = 'output window, operand 0, single buffered']
    #allocation3 [shape = 's32[1]{0}', space=sflag, size = 0x4, scoped, tag = 'scoped memory for tpu_custom_call.1']
    %12 = vsyncpa [#allocation3], 0
    // Predicated region
    $region2: #{tpu_custom_call.1} parent=1 // pred_check
      _
    $region3: #{tpu_custom_call.1} parent=1 // pred_check_branch
      %14 = sbr.rel (0) target = $region5
    $region4: #{tpu_custom_call.1} parent=1 // pred_region
      _
    $region5: #{tpu_custom_call.1} parent=1 // pred_fallthru
      _
    // Predicated region
    $region6: #{tpu_custom_call.1} parent=1 // pred_check
      _
    $region7: #{tpu_custom_call.1} parent=1 // pred_check_branch
      %16 = sbr.rel (0) target = $region9
    $region8: #{tpu_custom_call.1} parent=1 // pred_region
      _
    $region9: #{tpu_custom_call.1} parent=1 // pred_fallthru
      _
    // Predicated region
    $region10: #{tpu_custom_call.1} parent=1 // pred_check
      _
    $region11: #{tpu_custom_call.1} parent=1 // pred_check_branch
      %18 = sbr.rel (0) target = $region13
    $region12: #{tpu_custom_call.1} parent=1 // pred_region
      _
    $region13: #{tpu_custom_call.1} parent=1 // pred_fallthru
      _
    // Predicated region
    $region14: #{tpu_custom_call.1} parent=1 // pred_check
      _
    $region15: #{tpu_custom_call.1} parent=1 // pred_check_branch
      %20 = sbr.rel (0) target = $region17
    $region16: #{tpu_custom_call.1} parent=1 // pred_region
      _
    $region17: #{tpu_custom_call.1} parent=1 // pred_fallthru
      _
    // Predicated region
    $region18: #{tpu_custom_call.1} parent=1 // pred_check
      _
    $region19: #{tpu_custom_call.1} parent=1 // pred_check_branch
      %22 = sbr.rel (0) target = $region21
    $region20: #{tpu_custom_call.1} parent=1 // pred_region
      _
    $region21: #{tpu_custom_call.1} parent=1 // pred_fallthru
      _
    // Predicated region
    $region22: #{tpu_custom_call.1} parent=1 // pred_check
      _
    $region23: #{tpu_custom_call.1} parent=1 // pred_check_branch
      %24 = sbr.rel (0) target = $region25
    $region24: #{tpu_custom_call.1} parent=1 // pred_region
      _
    $region25: #{tpu_custom_call.1} parent=1 // pred_fallthru
      _
    // Predicated region
    $region26: #{tpu_custom_call.1} parent=1 // pred_check
      _
    $region27: #{tpu_custom_call.1} parent=1 // pred_check_branch
      %26 = sbr.rel (0) target = $region29
    $region28: #{tpu_custom_call.1} parent=1 // pred_region
      _
    $region29: #{tpu_custom_call.1} parent=1 // pred_fallthru
      _
    %v27 = vld [vmem:[%s0] sm:$0xff]
    %v28 = vld [vmem:[%s1] sm:$0xff]
    %v29 = vld [vmem:[%s1 + $0x8] sm:$0xff]
    %v30 = vld [vmem:[%s1 + $0x10] sm:$0xff]
    %v31 = vld [vmem:[%s1 + $0x18] sm:$0x7]
    %v32 = vld [vmem:[%s2] sm:$0x1]
    %v34 = vlaneseq
    %v35 = vshrl.u32 %v34, 7
    %v36 = vsub.s32 0, %v35
    %v37 = vrot.slane %v32, %v36
    %vm39 = vcmask 220160
    %v41 = vsel %vm39, %v27, 0
    %vm43 = vcmask 1042432
    %v45 = vsel %vm43, %v31, 0
    %47 = vmatprep.subr.mxu0 0.0
    %48 = vmatpush1.msra.mxu0 %v28
    %49 = vmatprep.subr.mxu0 0.0
    %50 = vmatpush1.msra.mxu0 %v29
    %51 = vmatprep.subr.mxu0 0.0
    %52 = vmatpush1.msra.mxu0 %v30
    %53 = vmatprep.subr.mxu0 0.0
    %54 = vmatpush1.msra.mxu0 %v45
    %55 = vmatprep.subr.mxu0 0.0
    %56 = vmatpush1.msra.mxu0 0.0
    %57 = vmatprep.subr.mxu0 0.0
    %58 = vmatpush1.msra.mxu0 0.0
    %59 = vmatprep.subr.mxu0 0.0
    %60 = vmatpush1.msra.mxu0 0.0
    %61 = vmatprep.subr.mxu0 0.0
    %62 = vmatpush1.msra.mxu0 0.0
    %63 = vmatprep.subr.mxu0 0.0
    %64 = vmatpush1.msra.mxu0 0.0
    %65 = vmatprep.subr.mxu0 0.0
    %66 = vmatpush1.msra.mxu0 0.0
    %67 = vmatprep.subr.mxu0 0.0
    %68 = vmatpush1.msra.mxu0 0.0
    %69 = vmatprep.subr.mxu0 0.0
    %70 = vmatpush1.msra.mxu0 0.0
    %71 = vmatprep.subr.mxu0 0.0
    %72 = vmatpush1.msra.mxu0 0.0
    %73 = vmatprep.subr.mxu0 0.0
    %74 = vmatpush1.msra.mxu0 0.0
    %75 = vmatprep.subr.mxu0 0.0
    %76 = vmatpush1.msra.mxu0 0.0
    %77 = vmatprep.subr.mxu0 0.0
    %78 = vmatpush1.msra.mxu0 0.0
    %79 = vmatprep.subr.mxu0 0.0
    %80 = vmatpush1.msra.mxu0 0.0
    %81 = vmatprep.subr.mxu0 0.0
    %82 = vmatpush1.msra.mxu0 0.0
    %83 = vmatprep.subr.mxu0 0.0
    %84 = vmatpush1.msra.mxu0 0.0
    %85 = vmatprep.subr.mxu0 0.0
    %86 = vmatpush1.msra.mxu0 0.0
    %87 = vmatprep.subr.mxu0 0.0
    %88 = vmatpush1.msra.mxu0 0.0
    %89 = vmatprep.subr.mxu0 0.0
    %90 = vmatpush1.msra.mxu0 0.0
    %91 = vmatprep.subr.mxu0 0.0
    %92 = vmatpush1.msra.mxu0 0.0
    %93 = vmatprep.subr.mxu0 0.0
    %94 = vmatpush1.msra.mxu0 0.0
    %95 = vmatprep.subr.mxu0 0.0
    %96 = vmatpush1.msra.mxu0 0.0
    %97 = vmatprep.subr.mxu0 0.0
    %98 = vmatpush1.msra.mxu0 0.0
    %99 = vmatprep.subr.mxu0 0.0
    %100 = vmatpush1.msra.mxu0 0.0
    %101 = vmatprep.subr.mxu0 0.0
    %102 = vmatpush1.msra.mxu0 0.0
    %103 = vmatprep.subr.mxu0 0.0
    %104 = vmatpush1.msra.mxu0 0.0
    %105 = vmatprep.subr.mxu0 0.0
    %106 = vmatpush1.msra.mxu0 0.0
    %107 = vmatprep.subr.mxu0 0.0
    %108 = vmatpush1.msra.mxu0 0.0
    %109 = vmatprep.subr.mxu0 0.0
    %110 = vmatpush1.msra.mxu0 0.0
    %111 = vmatprep.mubr.f32.mxu0 0.0
    %112 = vmatmul.mubr.f32.gmra.mrb[0].mxu0 %v41
    %v113 = vpop.f32.mrb[0].mxu0
    %v114 = vadd.f32 %v37, %v113
    %v115 = vpop.f32.mrb[0].mxu0
    %116 = vdwg.mxu0
    %v117 = vmax.f32 %v114, 0.0
    %v118 = vld [vmem:[%s3] sm:$0xff]
    %v119 = vld [vmem:[%s3 + $0x8] sm:$0xff]
    %v120 = vld [vmem:[%s3 + $0x10] sm:$0xff]
    %v121 = vld [vmem:[%s3 + $0x18] sm:$0xff]
    %v122 = vld [vmem:[%s4] sm:$0x1]
    %v124 = vlaneseq
    %v125 = vshrl.u32 %v124, 7
    %v126 = vsub.s32 0, %v125
    %v127 = vrot.slane %v122, %v126
    %vm129 = vcmask 261120
    %v131 = vsel %vm129, %v117, 0
    %133 = vmatprep.subr.mxu0 0.0
    %134 = vmatpush1.msra.mxu0 %v118
    %135 = vmatprep.subr.mxu0 0.0
    %136 = vmatpush1.msra.mxu0 %v119
    %137 = vmatprep.subr.mxu0 0.0
    %138 = vmatpush1.msra.mxu0 %v120
    %139 = vmatprep.subr.mxu0 0.0
    %140 = vmatpush1.msra.mxu0 %v121
    %141 = vmatprep.subr.mxu0 0.0
    %142 = vmatpush1.msra.mxu0 0.0
    %143 = vmatprep.subr.mxu0 0.0
    %144 = vmatpush1.msra.mxu0 0.0
    %145 = vmatprep.subr.mxu0 0.0
    %146 = vmatpush1.msra.mxu0 0.0
    %147 = vmatprep.subr.mxu0 0.0
    %148 = vmatpush1.msra.mxu0 0.0
    %149 = vmatprep.subr.mxu0 0.0
    %150 = vmatpush1.msra.mxu0 0.0
    %151 = vmatprep.subr.mxu0 0.0
    %152 = vmatpush1.msra.mxu0 0.0
    %153 = vmatprep.subr.mxu0 0.0
    %154 = vmatpush1.msra.mxu0 0.0
    %155 = vmatprep.subr.mxu0 0.0
    %156 = vmatpush1.msra.mxu0 0.0
    %157 = vmatprep.subr.mxu0 0.0
    %158 = vmatpush1.msra.mxu0 0.0
    %159 = vmatprep.subr.mxu0 0.0
    %160 = vmatpush1.msra.mxu0 0.0
    %161 = vmatprep.subr.mxu0 0.0
    %162 = vmatpush1.msra.mxu0 0.0
    %163 = vmatprep.subr.mxu0 0.0
    %164 = vmatpush1.msra.mxu0 0.0
    %165 = vmatprep.subr.mxu0 0.0
    %166 = vmatpush1.msra.mxu0 0.0
    %167 = vmatprep.subr.mxu0 0.0
    %168 = vmatpush1.msra.mxu0 0.0
    %169 = vmatprep.subr.mxu0 0.0
    %170 = vmatpush1.msra.mxu0 0.0
    %171 = vmatprep.subr.mxu0 0.0
    %172 = vmatpush1.msra.mxu0 0.0
    %173 = vmatprep.subr.mxu0 0.0
    %174 = vmatpush1.msra.mxu0 0.0
    %175 = vmatprep.subr.mxu0 0.0
    %176 = vmatpush1.msra.mxu0 0.0
    %177 = vmatprep.subr.mxu0 0.0
    %178 = vmatpush1.msra.mxu0 0.0
    %179 = vmatprep.subr.mxu0 0.0
    %180 = vmatpush1.msra.mxu0 0.0
    %181 = vmatprep.subr.mxu0 0.0
    %182 = vmatpush1.msra.mxu0 0.0
    %183 = vmatprep.subr.mxu0 0.0
    %184 = vmatpush1.msra.mxu0 0.0
    %185 = vmatprep.subr.mxu0 0.0
    %186 = vmatpush1.msra.mxu0 0.0
    %187 = vmatprep.subr.mxu0 0.0
    %188 = vmatpush1.msra.mxu0 0.0
    %189 = vmatprep.subr.mxu0 0.0
    %190 = vmatpush1.msra.mxu0 0.0
    %191 = vmatprep.subr.mxu0 0.0
    %192 = vmatpush1.msra.mxu0 0.0
    %193 = vmatprep.subr.mxu0 0.0
    %194 = vmatpush1.msra.mxu0 0.0
    %195 = vmatprep.subr.mxu0 0.0
    %196 = vmatpush1.msra.mxu0 0.0
    %197 = vmatprep.mubr.f32.mxu0 0.0
    %198 = vmatmul.mubr.f32.gmra.mrb[0].mxu0 %v131
    %v199 = vpop.f32.mrb[0].mxu0
    %v200 = vadd.f32 %v127, %v199
    %v201 = vpop.f32.mrb[0].mxu0
    %202 = vdwg.mxu0
    %v203 = vmax.f32 %v200, 0.0
    %v204 = vld [vmem:[%s5] sm:$0xff]
    %v205 = vld [vmem:[%s5 + $0x8] sm:$0xff]
    %v206 = vld [vmem:[%s5 + $0x10] sm:$0xff]
    %v207 = vld [vmem:[%s5 + $0x18] sm:$0xff]
    %v208 = vld [vmem:[%s5 + $0x20] sm:$0xff]
    %v209 = vld [vmem:[%s5 + $0x28] sm:$0xff]
    %v210 = vld [vmem:[%s5 + $0x30] sm:$0xff]
    %v211 = vld [vmem:[%s5 + $0x38] sm:$0xff]
    %v212 = vld [vmem:[%s6] sm:$0x1]
    %v214 = vlaneseq
    %v215 = vshrl.u32 %v214, 7
    %v216 = vsub.s32 0, %v215
    %v217 = vrot.slane %v212, %v216
    %vm219 = vcmask 523264
    %v221 = vsel %vm219, %v203, 0
    %223 = vmatprep.subr.mxu0 0.0
    %224 = vmatpush1.msra.mxu0 %v204
    %225 = vmatprep.subr.mxu0 0.0
    %226 = vmatpush1.msra.mxu0 %v205
    %227 = vmatprep.subr.mxu0 0.0
    %228 = vmatpush1.msra.mxu0 %v206
    %229 = vmatprep.subr.mxu0 0.0
    %230 = vmatpush1.msra.mxu0 %v207
    %231 = vmatprep.subr.mxu0 0.0
    %232 = vmatpush1.msra.mxu0 %v208
    %233 = vmatprep.subr.mxu0 0.0
    %234 = vmatpush1.msra.mxu0 %v209
    %235 = vmatprep.subr.mxu0 0.0
    %236 = vmatpush1.msra.mxu0 %v210
    %237 = vmatprep.subr.mxu0 0.0
    %238 = vmatpush1.msra.mxu0 %v211
    %239 = vmatprep.subr.mxu0 0.0
    %240 = vmatpush1.msra.mxu0 0.0
    %241 = vmatprep.subr.mxu0 0.0
    %242 = vmatpush1.msra.mxu0 0.0
    %243 = vmatprep.subr.mxu0 0.0
    %244 = vmatpush1.msra.mxu0 0.0
    %245 = vmatprep.subr.mxu0 0.0
    %246 = vmatpush1.msra.mxu0 0.0
    %247 = vmatprep.subr.mxu0 0.0
    %248 = vmatpush1.msra.mxu0 0.0
    %249 = vmatprep.subr.mxu0 0.0
    %250 = vmatpush1.msra.mxu0 0.0
    %251 = vmatprep.subr.mxu0 0.0
    %252 = vmatpush1.msra.mxu0 0.0
    %253 = vmatprep.subr.mxu0 0.0
    %254 = vmatpush1.msra.mxu0 0.0
    %255 = vmatprep.subr.mxu0 0.0
    %256 = vmatpush1.msra.mxu0 0.0
    %257 = vmatprep.subr.mxu0 0.0
    %258 = vmatpush1.msra.mxu0 0.0
    %259 = vmatprep.subr.mxu0 0.0
    %260 = vmatpush1.msra.mxu0 0.0
    %261 = vmatprep.subr.mxu0 0.0
    %262 = vmatpush1.msra.mxu0 0.0
    %263 = vmatprep.subr.mxu0 0.0
    %264 = vmatpush1.msra.mxu0 0.0
    %265 = vmatprep.subr.mxu0 0.0
    %266 = vmatpush1.msra.mxu0 0.0
    %267 = vmatprep.subr.mxu0 0.0
    %268 = vmatpush1.msra.mxu0 0.0
    %269 = vmatprep.subr.mxu0 0.0
    %270 = vmatpush1.msra.mxu0 0.0
    %271 = vmatprep.subr.mxu0 0.0
    %272 = vmatpush1.msra.mxu0 0.0
    %273 = vmatprep.subr.mxu0 0.0
    %274 = vmatpush1.msra.mxu0 0.0
    %275 = vmatprep.subr.mxu0 0.0
    %276 = vmatpush1.msra.mxu0 0.0
    %277 = vmatprep.subr.mxu0 0.0
    %278 = vmatpush1.msra.mxu0 0.0
    %279 = vmatprep.subr.mxu0 0.0
    %280 = vmatpush1.msra.mxu0 0.0
    %281 = vmatprep.subr.mxu0 0.0
    %282 = vmatpush1.msra.mxu0 0.0
    %283 = vmatprep.subr.mxu0 0.0
    %284 = vmatpush1.msra.mxu0 0.0
    %285 = vmatprep.subr.mxu0 0.0
    %286 = vmatpush1.msra.mxu0 0.0
    %287 = vmatprep.mubr.f32.mxu0 0.0
    %288 = vmatmul.mubr.f32.gmra.mrb[0].mxu0 %v221
    %v289 = vpop.f32.mrb[0].mxu0
    %v290 = vadd.f32 %v217, %v289
    %v291 = vpop.f32.mrb[0].mxu0
    %292 = vdwg.mxu0
    %vm293 = vcmask 64512
    %294 = vst.msk [vmem:[#allocation2] sm:$0xff] %vm293, %v290
    // Predicated region
    $region30: #{tpu_custom_call.1} parent=1 // pred_check
      _
    $region31: #{tpu_custom_call.1} parent=1 // pred_check_branch
      %296 = sbr.rel (0) target = $region33
    $region32: #{tpu_custom_call.1} parent=1 // pred_region
      %s298 = ssub.s32 128, 128
      %299 = vsyncadd [#allocation3], %s298
      %s301 = sshll.u32 [#allocation2], 4
      %s302 = int_to_ptr.vmem [resolvable:$true] %s301
      %304 = dma.vmem_to_hbm [thread:$0]  %s302, 128, %s7, [#allocation3]
    $region33: #{tpu_custom_call.1} parent=1 // pred_fallthru
      _
    // Predicated region
    $region34: #{tpu_custom_call.1} parent=1 // pred_check
      _
    $region35: #{tpu_custom_call.1} parent=1 // pred_check_branch
      %306 = sbr.rel (0) target = $region37
    $region36: #{tpu_custom_call.1} parent=1 // pred_region
      %307 = dma.done [#allocation3], 128
    $region37: #{tpu_custom_call.1} parent=1 // pred_fallthru
      _
    %308 = vsyncpa [#allocation3], 1

</llo_original>
